<compile_context>
chip_gen: v7x
topology: tpu7x:2x2x1
jax: 0.10.0
libtpu: 0.0.40
codegen_flags: <defaults>
</compile_context>

<pallas_src>
import functools

import jax
import jax.numpy as jnp
from jax.experimental import pallas as pl
from jax.experimental.pallas import tpu as pltpu


def _round_up(x: int, m: int) -> int:
    return ((x + m - 1) // m) * m


def _chomp_prefix_kernel(x_ref, o_ref, *, t_out: int):
    # x_ref: (tr, T) block, o_ref: (tr, T_out) block.  Static prefix slice of
    # the loaded view — the chomped tail is read (tiny: chomp_size per row)
    # but never stored.
    o_ref[...] = x_ref[:, :t_out]


def _copy_kernel(x_ref, o_ref):
    # Tiled-T path: identity copy; the chomp lives entirely in the grid extent
    # over T_out, and the ragged last tile's store is masked by Pallas.
    o_ref[...] = x_ref[...]


def chomp1d(x: jax.Array, chomp_size: int, *,
            block_bytes: int = 2 * 1024 * 1024,
            vmem_limit_bytes: int | None = None) -> jax.Array:
    """Drop the trailing `chomp_size` elements along the last axis.

    x: (N, C, T)  ->  (N, C, T - chomp_size)

    block_bytes: target per-block footprint.  2 MiB is safe on all
    generations at the default scoped-VMEM limit; on v6e/v7x use 4 MiB with
    vmem_limit_bytes ~ 32 MiB for a small additional gain.
    """
    n, c, t = x.shape
    if chomp_size == 0:
        # Chomp1d(padding=0): identity.  (Literal PyTorch `x[..., :-0]` would
        # be an empty tensor; that degenerate is never what callers intend.)
        return x
    assert 0 < chomp_size < t, "need 0 < chomp_size < T"
    t_out = t - chomp_size

    itemsize = jnp.dtype(x.dtype).itemsize
    sub = 8 * max(1, 4 // itemsize)  # sublane multiple for this dtype packing
    rows = n * c
    x2 = x.reshape(rows, t)          # free: row-major contiguous

    if t * sub * itemsize <= block_bytes:
        # --- Full-time-extent path (typical TCN shapes) -------------------
        tr_cap = max(sub, (block_bytes // (t * itemsize)) // sub * sub)
        tr = min(tr_cap, _round_up(rows, sub))
        grid = (pl.cdiv(rows, tr),)
        kernel = functools.partial(_chomp_prefix_kernel, t_out=t_out)
        in_specs = [pl.BlockSpec((tr, t), lambda i: (i, 0))]
        out_specs = pl.BlockSpec((tr, t_out), lambda i: (i, 0))
        dim_sem = ("parallel",)
    else:
        # --- Very long sequences: tile T with 128-aligned tiles -----------
        tr = min(_round_up(rows, sub), 8 * sub)
        tt = max(128, (block_bytes // (tr * itemsize)) // 128 * 128)
        tt = min(tt, _round_up(t_out, 128))
        grid = (pl.cdiv(rows, tr), pl.cdiv(t_out, tt))
        kernel = _copy_kernel
        idx = lambda i, k: (i, k)
        in_specs = [pl.BlockSpec((tr, tt), idx)]
        out_specs = pl.BlockSpec((tr, tt), idx)
        dim_sem = ("parallel", "parallel")

    y2 = pl.pallas_call(
        kernel,
        out_shape=jax.ShapeDtypeStruct((rows, t_out), x.dtype),
        grid_spec=pltpu.PrefetchScalarGridSpec(
            num_scalar_prefetch=0,
            grid=grid,
            in_specs=in_specs,
            out_specs=out_specs,
        ),
        compiler_params=pltpu.CompilerParams(
            dimension_semantics=dim_sem,
            vmem_limit_bytes=vmem_limit_bytes,
        ),
    )(x2)
    return y2.reshape(n, c, t_out)


if __name__ == "__main__":
    key = jax.random.PRNGKey(0)

    # Main check: module-consistent small shape (N, C, T) = (2, 4, 16), chomp=3.
    chomp_size = 3
    N, C, T = 2, 4, 16
    x = jax.random.normal(key, (N, C, T), dtype=jnp.float32)
    y = chomp1d(x, chomp_size)
    jax.block_until_ready(y)
    y_ref = x[:, :, :-chomp_size]
    assert y.shape == (N, C, T - chomp_size), y.shape
    assert jnp.array_equal(y, y_ref), "mismatch vs reference slice (full-T path)"

    # Secondary check: force the tiled-T path with a tiny block budget so the
    # ragged (masked) last time tile is exercised (t_out = 293, tile = 128).
    key2 = jax.random.PRNGKey(1)
    x2 = jax.random.normal(key2, (2, 4, 300), dtype=jnp.float32)
    y2 = chomp1d(x2, 7, block_bytes=4096)
    jax.block_until_ready(y2)
    assert jnp.array_equal(y2, x2[:, :, :-7]), "mismatch vs reference slice (tiled-T path)"

    print("KERNEL_OK")
</pallas_src>

<mosaic_0001>
module attributes {stable_mosaic.version = 11 : i64} {
  func.func @_chomp_prefix_kernel(%arg0: i32, %arg1: memref<8x16xf32, #tpu.memory_space<vmem>>, %arg2: memref<8x13xf32, #tpu.memory_space<vmem>>) attributes {dimension_semantics = [#tpu.dimension_semantics<parallel>], iteration_bounds = array<i64: 1>, scalar_prefetch = 0 : i64, scratch_operands = 0 : i64, tpu.core_type = #tpu.core_type<tc>, window_params = [{transform_indices = @transform_0, window_bounds = array<i64: 8, 16>}, {transform_indices = @transform_1, window_bounds = array<i64: 8, 13>}]} {
    %c0 = arith.constant 0 : index
    %c0_0 = arith.constant 0 : index
    %0 = vector.load %arg1[%c0, %c0_0] : memref<8x16xf32, #tpu.memory_space<vmem>>, vector<8x13xf32>
    %c0_1 = arith.constant 0 : index
    %c0_2 = arith.constant 0 : index
    %1 = vector.load %arg2[%c0_1, %c0_2] : memref<8x13xf32, #tpu.memory_space<vmem>>, vector<8x13xf32>
    tpu.vector_store %arg2[%c0_1, %c0_2], %0 {strides = array<i32>} : memref<8x13xf32, #tpu.memory_space<vmem>>, vector<8x13xf32>,
    return
  }
  func.func @transform_0(%arg0: i32) -> (i32, i32) {
    %c0_i32 = arith.constant 0 : i32
    %c0_i32_0 = arith.constant 0 : i32
    return %arg0, %c0_i32 : i32, i32
  }
  func.func @transform_1(%arg0: i32) -> (i32, i32) {
    %c0_i32 = arith.constant 0 : i32
    %c0_i32_0 = arith.constant 0 : i32
    return %arg0, %c0_i32 : i32, i32
  }
}

</mosaic_0001>

<llo_original>
// kernel: tpu_custom_call.1
$region0: #{tpu_custom_call.1}
  #allocation0 [shape = 'u32[]', space=smem, size = 0x4, offset = 0x4, fixed_abs, tag = 'smem constant byte address 0x4 - core index']
  #allocation1 [shape = 'u32[144,128]{1,0:T(1,128)}', space=vmem, size = 0x12000, scoped, tag = 'internal scratch']
  %s0 = inlined_call_operand.hbm [shape: f32[8,16], index: 0, kind: input, shape index: {}]
  %s1 = inlined_call_operand.hbm [shape: f32[8,13], index: 1, kind: output, shape index: {}]
  %s2 = sld [smem:[#allocation0]]
  $region18: #{tpu_custom_call.1} parent=0
    _
  %s4 = ssub.s32 1, %s2
  %s5 = scalar_select 0, %s4, %s2
  $region1: #{tpu_custom_call.1} parent=0
    #allocation2 [shape = 'u8[4096]{0}', space=vmem, size = 0x1000, scoped, tag = 'input window, operand 0, single buffered']
    #allocation3 [shape = 's32[1]{0}', space=sflag, size = 0x4, scoped, tag = 'scoped memory for tpu_custom_call.1']
    #allocation4 [shape = 's32[1]{0}', space=sflag, size = 0x4, scoped, tag = 'scoped memory for tpu_custom_call.1']
    #allocation5 [shape = 'u8[4096]{0}', space=vmem, size = 0x1000, scoped, tag = 'output window, operand 0, single buffered']
    %6 = vsyncpa [#allocation3], 0
    %7 = vsyncpa [#allocation4], 0
    // Predicated region
    $region2: #{tpu_custom_call.1} parent=1 // pred_check
      _
    $region3: #{tpu_custom_call.1} parent=1 // pred_check_branch
      %9 = sbr.rel (0) target = $region5
    $region4: #{tpu_custom_call.1} parent=1 // pred_region
      %s11 = ssub.s32 128, 128
      %12 = vsyncadd [#allocation3], %s11
      %s14 = sshll.u32 [#allocation2], 4
      %s15 = int_to_ptr.vmem [resolvable:$true] %s14
      %17 = dma.hbm_to_vmem [thread:$0]  %s0, 128, %s15, [#allocation3]
    $region5: #{tpu_custom_call.1} parent=1 // pred_fallthru
      _
    // Predicated region
    $region6: #{tpu_custom_call.1} parent=1 // pred_check
      _
    $region7: #{tpu_custom_call.1} parent=1 // pred_check_branch
      %19 = sbr.rel (0) target = $region9
    $region8: #{tpu_custom_call.1} parent=1 // pred_region
      %20 = dma.done [#allocation3], 128
    $region9: #{tpu_custom_call.1} parent=1 // pred_fallthru
      _
    %v21 = vld [vmem:[#allocation2] sm:$0xff]
    %vm22 = vcmask 105472
    %23 = vst.msk [vmem:[#allocation5] sm:$0xff] %vm22, %v21
    // Predicated region
    $region10: #{tpu_custom_call.1} parent=1 // pred_check
      _
    $region11: #{tpu_custom_call.1} parent=1 // pred_check_branch
      %25 = sbr.rel (0) target = $region13
    $region12: #{tpu_custom_call.1} parent=1 // pred_region
      %s27 = ssub.s32 128, 128
      %28 = vsyncadd [#allocation4], %s27
      %s30 = sshll.u32 [#allocation5], 4
      %s31 = int_to_ptr.vmem [resolvable:$true] %s30
      %33 = dma.vmem_to_hbm [thread:$0]  %s31, 128, %s1, [#allocation4]
    $region13: #{tpu_custom_call.1} parent=1 // pred_fallthru
      _
    // Predicated region
    $region14: #{tpu_custom_call.1} parent=1 // pred_check
      _
    $region15: #{tpu_custom_call.1} parent=1 // pred_check_branch
      %35 = sbr.rel (0) target = $region17
    $region16: #{tpu_custom_call.1} parent=1 // pred_region
      %36 = dma.done [#allocation4], 128
    $region17: #{tpu_custom_call.1} parent=1 // pred_fallthru
      _
    %37 = vsyncpa [#allocation3], 1
    %38 = vsyncpa [#allocation4], 1

</llo_original>
